<compile_context>
chip_gen: v7x
topology: tpu7x:2x2x1
jax: 0.10.0
libtpu: 0.0.40
codegen_flags: <defaults>
</compile_context>

<pallas_src>
import functools
import math

import jax
import jax.numpy as jnp
from jax.experimental import pallas as pl
from jax.experimental.pallas import tpu as pltpu


_LANE = 128          # lane width  (last dim granularity)
_SUBLANE = 8         # sublane     (second-to-last dim granularity, f32)


# ----------------------------- helpers ------------------------------------- #

def _round_up(x, m):
    return (x + m - 1) // m * m


def _largest_tile(dim, cap):
    """Largest multiple of 128 that divides `dim` (itself a multiple of 128), <= cap."""
    t = min(cap, dim)
    t -= t % _LANE
    t = max(t, _LANE)
    while dim % t != 0:
        t -= _LANE
    return t


@functools.lru_cache(maxsize=None)
def _vmem_config():
    """(vmem_limit_bytes, max_tile, min_n_tiles) adapted to the local chip."""
    try:
        phys = int(getattr(pltpu.get_tpu_info(), "vmem_capacity_bytes", 0) or 0)
    except Exception:
        phys = 0
    if phys <= 0:
        phys = 64 * 1024 * 1024                 # conservative: assume v7x-sized VMEM
    if phys >= 128 * 1024 * 1024:               # v5e / v6e: big VMEM, 1 TensorCore
        return 96 * 1024 * 1024, 1024, 1
    return 52 * 1024 * 1024, 512, 2             # v7x (or unknown): small VMEM, 2 cores


def _pick_tiles(k_pad, n_pad, b_pad, n_streams, w_bytes, out_bytes, tile_cap=None):
    """Pick (tk, tn) so double-buffered weight streams + x/out/acc buffers fit VMEM."""
    vmem_limit, max_tile, min_n_tiles = _vmem_config()
    cap = max_tile if tile_cap is None else tile_cap
    budget = vmem_limit - (2 << 20)             # headroom for compiler internals

    tk = _largest_tile(k_pad, cap)
    tn = _largest_tile(n_pad, cap)
    # v7x: keep >= 2 tiles on the parallel N axis so both TensorCores get work.
    if min_n_tiles > 1 and n_pad // tn < min_n_tiles and n_pad >= min_n_tiles * _LANE:
        tn = _largest_tile(n_pad, n_pad // min_n_tiles)

    def usage(tk_, tn_):
        return (2 * n_streams * tk_ * tn_ * w_bytes   # double-buffered weight streams
                + 2 * b_pad * tk_ * 4                 # x double buffer (f32)
                + 2 * b_pad * tn_ * out_bytes         # output double buffer
                + b_pad * tn_ * 4                     # f32 accumulator scratch
                + 2 * tn_ * 4)                        # bias row double buffer

    while usage(tk, tn) > budget:
        if tk >= tn and tk > _LANE:
            tk = _largest_tile(k_pad, tk - _LANE)
        elif tn > _LANE:
            tn = _largest_tile(n_pad, tn - _LANE)
        elif tk > _LANE:
            tk = _largest_tile(k_pad, tk - _LANE)
        else:
            # TODO(synk): add a batch grid axis if B_pad alone blows the VMEM budget.
            break
    return tk, tn


def _pad2(a, rows, cols):
    pr, pc = rows - a.shape[0], cols - a.shape[1]
    if pr or pc:
        a = jnp.pad(a, ((0, pr), (0, pc)))
    return a


# ----------------------------- kernels ------------------------------------- #
# NOTE: the f32 VMEM accumulator pattern below is only correct because the
# reduction (K) axis is the INNERMOST grid axis -- all K steps for a given N
# tile are contiguous.  Do not reorder the grid.

def _linear1_kernel(x_ref, w_ref, b_ref, o_ref, acc_ref):
    """single weight: y = x @ w + b, K-tiled accumulation."""
    k = pl.program_id(1)

    @pl.when(k == 0)
    def _():
        acc_ref[...] = jnp.zeros_like(acc_ref)

    acc_ref[...] += jnp.dot(x_ref[...], w_ref[...].astype(jnp.float32),
                            preferred_element_type=jnp.float32)

    @pl.when(k == pl.num_programs(1) - 1)
    def _():
        o_ref[...] = (acc_ref[...] + b_ref[...]).astype(o_ref.dtype)


def _linear2_kernel(x_ref, w0_ref, w1_ref, b_ref, o_ref, acc_ref):
    """base + eps: y = x @ (w0 + w1) + b; fuse-add done per (tk, tn) tile."""
    k = pl.program_id(1)

    @pl.when(k == 0)
    def _():
        acc_ref[...] = jnp.zeros_like(acc_ref)

    w = w0_ref[...].astype(jnp.float32) + w1_ref[...].astype(jnp.float32)
    acc_ref[...] += jnp.dot(x_ref[...], w, preferred_element_type=jnp.float32)

    @pl.when(k == pl.num_programs(1) - 1)
    def _():
        o_ref[...] = (acc_ref[...] + b_ref[...]).astype(o_ref.dtype)


def _linear_vec_kernel(a_ref, x_ref, w_ref, weps_ref, wstk_ref, b_ref,
                       o_ref, acc_ref, *, num_weights):
    """base + softmax(alpha)-weighted stack + eps; a_ref = (nw,) coeffs in SMEM."""
    k = pl.program_id(1)

    @pl.when(k == 0)
    def _():
        acc_ref[...] = jnp.zeros_like(acc_ref)

    w = w_ref[...].astype(jnp.float32) + weps_ref[...].astype(jnp.float32)
    for i in range(num_weights):                      # static unroll, nw is small
        w = w + a_ref[i] * wstk_ref[i].astype(jnp.float32)
    acc_ref[...] += jnp.dot(x_ref[...], w, preferred_element_type=jnp.float32)

    @pl.when(k == pl.num_programs(1) - 1)
    def _():
        o_ref[...] = (acc_ref[...] + b_ref[...]).astype(o_ref.dtype)


def _fuse_vec_kernel(a_ref, w_ref, weps_ref, wstk_ref, o_ref, *, num_weights):
    """Materialize-once fusion: W_fused tile = w + weps + sum_i a[i]*wstk[i]."""
    w = w_ref[...].astype(jnp.float32) + weps_ref[...].astype(jnp.float32)
    for i in range(num_weights):
        w = w + a_ref[i] * wstk_ref[i].astype(jnp.float32)
    o_ref[...] = w.astype(o_ref.dtype)


# ----------------------------- wrappers ------------------------------------- #

def _linear_call(x, w_list, bias_row, n_out, *, tile_cap=None):
    """y[:, :n_out] = x @ (sum of w_list) + bias_row.

    w_list entries are pre-padded lane-major (K_pad, N_pad) arrays (1 or 2 of them);
    bias_row is a pre-summed, pre-padded (1, N_pad) f32 row.
    """
    B, K = x.shape
    K_pad, N_pad = w_list[0].shape
    B_pad = _round_up(B, _SUBLANE)
    w_bytes = jnp.dtype(w_list[0].dtype).itemsize
    out_bytes = jnp.dtype(x.dtype).itemsize
    vmem_limit, _, _ = _vmem_config()
    tk, tn = _pick_tiles(K_pad, N_pad, B_pad, len(w_list), w_bytes, out_bytes, tile_cap)

    x_p = _pad2(x, B_pad, K_pad)

    grid = (N_pad // tn, K_pad // tk)                 # reduction (K) axis innermost
    w_spec = pl.BlockSpec((tk, tn), lambda j, k: (k, j))
    in_specs = ([pl.BlockSpec((B_pad, tk), lambda j, k: (0, k))]
                + [w_spec] * len(w_list)
                + [pl.BlockSpec((1, tn), lambda j, k: (0, j))])
    kernel = _linear1_kernel if len(w_list) == 1 else _linear2_kernel

    out = pl.pallas_call(
        kernel,
        out_shape=jax.ShapeDtypeStruct((B_pad, N_pad), x.dtype),
        grid_spec=pltpu.PrefetchScalarGridSpec(
            num_scalar_prefetch=0,
            grid=grid,
            in_specs=in_specs,
            out_specs=pl.BlockSpec((B_pad, tn), lambda j, k: (0, j)),
            scratch_shapes=[pltpu.VMEM((B_pad, tn), jnp.float32)]),
        compiler_params=pltpu.CompilerParams(
            dimension_semantics=("parallel", "arbitrary"),
            vmem_limit_bytes=vmem_limit),
        cost_estimate=pl.CostEstimate(
            flops=2 * B_pad * N_pad * K_pad + (len(w_list) - 1) * K_pad * N_pad,
            transcendentals=0,
            bytes_accessed=(w_bytes * len(w_list) * K_pad * N_pad
                            + out_bytes * B_pad * K_pad * (N_pad // tn)
                            + out_bytes * B_pad * N_pad + 4 * N_pad)),
    )(x_p, *w_list, bias_row)
    return out[:B, :n_out]


def _linear_vec_call(x, a, w_kn, weps_kn, wstk_kn, bias_row, n_out, *, tile_cap=None):
    """Streaming fused-vector path: softmax coeffs `a` fed via SMEM scalar prefetch."""
    B, K = x.shape
    K_pad, N_pad = w_kn.shape
    nw = wstk_kn.shape[0]
    B_pad = _round_up(B, _SUBLANE)
    w_bytes = jnp.dtype(w_kn.dtype).itemsize
    out_bytes = jnp.dtype(x.dtype).itemsize
    vmem_limit, _, _ = _vmem_config()
    tk, tn = _pick_tiles(K_pad, N_pad, B_pad, 2 + nw, w_bytes, out_bytes, tile_cap)

    x_p = _pad2(x, B_pad, K_pad)

    grid = (N_pad // tn, K_pad // tk)                 # reduction (K) axis innermost
    w_spec = pl.BlockSpec((tk, tn), lambda j, k, a_ref: (k, j))
    in_specs = [
        pl.BlockSpec((B_pad, tk), lambda j, k, a_ref: (0, k)),
        w_spec, w_spec,
        pl.BlockSpec((nw, tk, tn), lambda j, k, a_ref: (0, k, j)),
        pl.BlockSpec((1, tn), lambda j, k, a_ref: (0, j)),
    ]

    out = pl.pallas_call(
        functools.partial(_linear_vec_kernel, num_weights=nw),
        out_shape=jax.ShapeDtypeStruct((B_pad, N_pad), x.dtype),
        grid_spec=pltpu.PrefetchScalarGridSpec(
            num_scalar_prefetch=1,
            grid=grid,
            in_specs=in_specs,
            out_specs=pl.BlockSpec((B_pad, tn), lambda j, k, a_ref: (0, j)),
            scratch_shapes=[pltpu.VMEM((B_pad, tn), jnp.float32)]),
        compiler_params=pltpu.CompilerParams(
            dimension_semantics=("parallel", "arbitrary"),
            vmem_limit_bytes=vmem_limit),
        cost_estimate=pl.CostEstimate(
            flops=2 * B_pad * N_pad * K_pad + (1 + 2 * nw) * K_pad * N_pad,
            transcendentals=0,
            bytes_accessed=(w_bytes * (2 + nw) * K_pad * N_pad
                            + out_bytes * B_pad * K_pad * (N_pad // tn)
                            + out_bytes * B_pad * N_pad + 4 * N_pad)),
    )(a, x_p, w_kn, weps_kn, wstk_kn, bias_row)
    return out[:B, :n_out]


def _fuse_weights_vec(a, w_kn, weps_kn, wstk_kn, out_dtype, tile_cap=None):
    """Materialize W_fused = w + weps + sum_i a[i]*wstk[i] once, as (K_pad, N_pad)."""
    K_pad, N_pad = w_kn.shape
    nw = wstk_kn.shape[0]
    w_bytes = jnp.dtype(w_kn.dtype).itemsize
    vmem_limit, _, _ = _vmem_config()
    # Count the output tile as one extra double-buffered stream; no batch buffers.
    tk, tn = _pick_tiles(K_pad, N_pad, 0, 3 + nw, w_bytes,
                         jnp.dtype(out_dtype).itemsize, tile_cap)
    grid = (K_pad // tk, N_pad // tn)
    w_spec = pl.BlockSpec((tk, tn), lambda i, j, a_ref: (i, j))
    return pl.pallas_call(
        functools.partial(_fuse_vec_kernel, num_weights=nw),
        out_shape=jax.ShapeDtypeStruct((K_pad, N_pad), out_dtype),
        grid_spec=pltpu.PrefetchScalarGridSpec(
            num_scalar_prefetch=1,
            grid=grid,
            in_specs=[w_spec, w_spec,
                      pl.BlockSpec((nw, tk, tn), lambda i, j, a_ref: (0, i, j))],
            out_specs=pl.BlockSpec((tk, tn), lambda i, j, a_ref: (i, j))),
        compiler_params=pltpu.CompilerParams(
            dimension_semantics=("parallel", "parallel"),
            vmem_limit_bytes=vmem_limit),
    )(a, w_kn, weps_kn, wstk_kn)


# ------------------------------ module ------------------------------------- #

class FuseLinear:
    """JAX/Pallas port of the PyTorch FuseLinear module."""

    def __init__(self, in_features, out_features, *, bias=True, num_weights=-1,
                 alpha=None, key=None, dtype=jnp.float32, weight_dtype=None,
                 tile_cap=None):
        if num_weights > 0 and alpha is None:
            raise ValueError("alpha is required when num_weights > 0")
        self.in_features = in_features
        self.out_features = out_features
        self.num_weights = num_weights
        self.alpha = alpha
        self._bias = bias
        self.tile_cap = tile_cap
        self.dtype = dtype
        self.weight_dtype = dtype if weight_dtype is None else weight_dtype
        self._k_pad = _round_up(in_features, _LANE)
        self._n_pad = _round_up(out_features, _LANE)
        self._w_fused = None
        self._b_fused = None

        key = jax.random.PRNGKey(0) if key is None else key
        ks = jax.random.split(key, 6)
        # kaiming_uniform_(a=sqrt(5)) on (out, in) -> bound = 1/sqrt(fan_in)
        bound = 1.0 / math.sqrt(in_features)
        self.weight = jax.random.uniform(
            ks[0], (out_features, in_features), dtype, -bound, bound)
        # eps params are torch.empty (uninitialized) in the original; use a small
        # deterministic init so reference checks are meaningful.
        self.weight_eps = 0.01 * jax.random.normal(
            ks[2], (out_features, in_features), dtype)
        if bias:
            self.bias = jax.random.uniform(ks[1], (out_features,), dtype, -bound, bound)
            self.bias_eps = 0.01 * jax.random.normal(ks[3], (out_features,), dtype)
        else:
            self.bias = None
            self.bias_eps = None
        if num_weights > 0:
            self.weights = 0.1 * jax.random.normal(
                ks[4], (num_weights, out_features, in_features), dtype)
            self.biaes = (0.1 * jax.random.normal(ks[5], (num_weights, out_features), dtype)
                          if bias else None)
        self._refresh_device_params()

    # Parameter-update-time layout prep: transpose to lane-major (K_pad, N_pad) and
    # pad ONCE, so each forward only reads each weight stream once from HBM.
    def _refresh_device_params(self):
        kp, np_, wd = self._k_pad, self._n_pad, self.weight_dtype
        K, N = self.in_features, self.out_features
        self._w_kn = _pad2(self.weight.T, kp, np_).astype(wd)
        self._weps_kn = _pad2(self.weight_eps.T, kp, np_).astype(wd)
        if self.num_weights > 0:
            self._wstk_kn = jnp.pad(jnp.transpose(self.weights, (0, 2, 1)),
                                    ((0, 0), (0, kp - K), (0, np_ - N))).astype(wd)
        zero_row = jnp.zeros((1, np_), jnp.float32)
        if self._bias:
            self._b_row = _pad2(self.bias.astype(jnp.float32).reshape(1, -1), 1, np_)
            self._beps_row = _pad2(self.bias_eps.astype(jnp.float32).reshape(1, -1), 1, np_)
            if self.num_weights > 0:
                self._bstk = jnp.pad(self.biaes.astype(jnp.float32), ((0, 0), (0, np_ - N)))
        else:
            self._b_row = zero_row
            self._beps_row = zero_row
            if self.num_weights > 0:
                self._bstk = jnp.zeros((self.num_weights, np_), jnp.float32)
        self._w_fused = None        # any parameter change invalidates the fused cache
        self._b_fused = None

    def set_base_and_vectors(self, base=None, vectors=None):
        if base is not None:
            self.weight = jnp.asarray(base["weight"], self.dtype)
            if self._bias:
                self.bias = jnp.asarray(base["bias"], self.dtype)
        if vectors is not None:
            self.weights = jnp.asarray(vectors["weight"], self.dtype)
            if self._bias:
                self.biaes = jnp.asarray(vectors["bias"], self.dtype)
        self._refresh_device_params()

    def cache_fused(self):
        """Materialize W_fused / b_fused once (e.g. after each alpha/eps update).

        Subsequent forwards stream a single weight from HBM instead of
        (2 + num_weights) streams -- the big win for repeated inference.
        """
        if self.num_weights == -1:
            self._w_fused, self._b_fused = self._weps_kn, self._beps_row
        elif self.num_weights == 0:
            self._w_fused = (self._w_kn.astype(jnp.float32)
                             + self._weps_kn.astype(jnp.float32)).astype(self.weight_dtype)
            self._b_fused = self._b_row + self._beps_row
        else:
            a = jax.nn.softmax(self.alpha.astype(jnp.float32), axis=0)
            self._w_fused = _fuse_weights_vec(a, self._w_kn, self._weps_kn,
                                              self._wstk_kn, self.weight_dtype,
                                              tile_cap=self.tile_cap)
            self._b_fused = (self._b_row + self._beps_row
                             + jnp.dot(a, self._bstk).reshape(1, -1))

    def clear_fused_cache(self):
        self._w_fused = None
        self._b_fused = None

    def __call__(self, x):
        if self._w_fused is not None:
            return _linear_call(x, [self._w_fused], self._b_fused,
                                self.out_features, tile_cap=self.tile_cap)
        if self.num_weights == -1:
            return _linear_call(x, [self._weps_kn], self._beps_row,
                                self.out_features, tile_cap=self.tile_cap)
        if self.num_weights == 0:
            return _linear_call(x, [self._w_kn, self._weps_kn],
                                self._b_row + self._beps_row,
                                self.out_features, tile_cap=self.tile_cap)
        # Bias fusion (O(nw*N)) is trivial -> done here in XLA; weights fused in-kernel.
        a = jax.nn.softmax(self.alpha.astype(jnp.float32), axis=0)
        bias_row = self._b_row + self._beps_row + jnp.dot(a, self._bstk).reshape(1, -1)
        return _linear_vec_call(x, a, self._w_kn, self._weps_kn, self._wstk_kn,
                                bias_row, self.out_features, tile_cap=self.tile_cap)


# ------------------------ pure-JAX references ------------------------------- #

def _ref_eps_only(x, m):
    y = x @ m.weight_eps.T
    return y + m.bias_eps if m._bias else y


def _ref_base_eps(x, m):
    y = x @ (m.weight + m.weight_eps).T
    return y + (m.bias + m.bias_eps) if m._bias else y


def _ref_vectors(x, m):
    a = jax.nn.softmax(m.alpha, axis=0)
    W = m.weight + jnp.sum(a[:, None, None] * m.weights, axis=0) + m.weight_eps
    y = x @ W.T
    if m._bias:
        y = y + (m.bias + jnp.sum(a[:, None] * m.biaes, axis=0) + m.bias_eps)
    return y


# --------------------------------- main ------------------------------------- #

if __name__ == "__main__":
    # Keep the XLA reference matmuls at full f32 so they match the kernel's
    # f32-accumulated MXU path.
    jax.config.update("jax_default_matmul_precision", "highest")

    key = jax.random.PRNGKey(0)
    k_x, k_a, k_m1, k_m2, k_m3, k_x2, k_m4 = jax.random.split(key, 7)

    B, K, N, NW = 8, 256, 256, 4
    x = jax.random.normal(k_x, (B, K), jnp.float32)
    alpha = jax.random.normal(k_a, (NW,), jnp.float32)

    # tile_cap=128 -> grid (2, 2): exercises the parallel N axis and the K
    # accumulation (acc init / bias-on-last-step) at small shapes.
    m_eps = FuseLinear(K, N, num_weights=-1, key=k_m1, tile_cap=128)
    y_eps = jax.block_until_ready(m_eps(x))
    assert jnp.allclose(y_eps, _ref_eps_only(x, m_eps), atol=1e-3, rtol=1e-3)

    m_base = FuseLinear(K, N, num_weights=0, key=k_m2, tile_cap=128)
    y_base = jax.block_until_ready(m_base(x))
    assert jnp.allclose(y_base, _ref_base_eps(x, m_base), atol=1e-3, rtol=1e-3)

    m_vec = FuseLinear(K, N, num_weights=NW, alpha=alpha, key=k_m3, tile_cap=128)
    y_vec = jax.block_until_ready(m_vec(x))
    assert jnp.allclose(y_vec, _ref_vectors(x, m_vec), atol=1e-3, rtol=1e-3)

    # Materialize-once path must match the streaming path.
    m_vec.cache_fused()
    y_vec_cached = jax.block_until_ready(m_vec(x))
    assert jnp.allclose(y_vec_cached, y_vec, atol=1e-4, rtol=1e-4)
    m_vec.clear_fused_cache()

    # Unaligned shapes exercise the pad-and-slice path (B not multiple of 8,
    # K / N not multiples of 128).
    B2, K2, N2 = 5, 200, 72
    x2 = jax.random.normal(k_x2, (B2, K2), jnp.float32)
    m_un = FuseLinear(K2, N2, num_weights=0, key=k_m4)
    y_un = jax.block_until_ready(m_un(x2))
    assert jnp.allclose(y_un, _ref_base_eps(x2, m_un), atol=1e-3, rtol=1e-3)

    # bf16 weight-streaming path: halves the dominant HBM stream; f32 accumulation.
    # Compared against the f32 reference with a loosened tolerance (weight quantization).
    m_bf = FuseLinear(K, N, num_weights=NW, alpha=alpha, key=k_m3,
                      weight_dtype=jnp.bfloat16, tile_cap=128)
    y_bf = jax.block_until_ready(m_bf(x))
    assert jnp.allclose(y_bf, _ref_vectors(x, m_bf), atol=5e-2, rtol=5e-2)

    print("KERNEL_OK")
</pallas_src>

<mosaic_0001>
module attributes {stable_mosaic.version = 11 : i64} {
  func.func @_linear1_kernel(%arg0: i32, %arg1: i32, %arg2: memref<8x128xf32, #tpu.memory_space<vmem>>, %arg3: memref<128x128xf32, #tpu.memory_space<vmem>>, %arg4: memref<1x128xf32, #tpu.memory_space<vmem>>, %arg5: memref<8x128xf32, #tpu.memory_space<vmem>>, %arg6: memref<8x128xf32, #tpu.memory_space<vmem>>) attributes {dimension_semantics = [#tpu.dimension_semantics<parallel>, #tpu.dimension_semantics<arbitrary>], iteration_bounds = array<i64: 2, 2>, scalar_prefetch = 0 : i64, scratch_operands = 1 : i64, tpu.core_type = #tpu.core_type<tc>, window_params = [{transform_indices = @transform_0, window_bounds = array<i64: 8, 128>}, {transform_indices = @transform_1, window_bounds = array<i64: 128, 128>}, {transform_indices = @transform_2, window_bounds = array<i64: 1, 128>}, {transform_indices = @transform_3, window_bounds = array<i64: 8, 128>}]} {
    %c0_i32 = arith.constant 0 : i32
    %0 = arith.cmpi eq, %arg1, %c0_i32 : i32
    %1 = arith.extui %0 : i1 to i32
    %c0_i32_0 = arith.constant 0 : i32
    %2 = arith.cmpi ne, %1, %c0_i32_0 : i32
    scf.if %2 {
      %cst_9 = arith.constant 0.000000e+00 : f32
      %12 = vector.broadcast %cst_9 : f32 to vector<8x128xf32>
      %c0_10 = arith.constant 0 : index
      %c0_11 = arith.constant 0 : index
      %13 = vector.load %arg6[%c0_10, %c0_11] : memref<8x128xf32, #tpu.memory_space<vmem>>, vector<8x128xf32>
      tpu.vector_store %arg6[%c0_10, %c0_11], %12 {strides = array<i32>} : memref<8x128xf32, #tpu.memory_space<vmem>>, vector<8x128xf32>,
    } else {
    }
    %c0 = arith.constant 0 : index
    %c0_1 = arith.constant 0 : index
    %3 = vector.load %arg6[%c0, %c0_1] : memref<8x128xf32, #tpu.memory_space<vmem>>, vector<8x128xf32>
    %c0_2 = arith.constant 0 : index
    %c0_3 = arith.constant 0 : index
    %4 = vector.load %arg2[%c0_2, %c0_3] : memref<8x128xf32, #tpu.memory_space<vmem>>, vector<8x128xf32>
    %c0_4 = arith.constant 0 : index
    %c0_5 = arith.constant 0 : index
    %5 = vector.load %arg3[%c0_4, %c0_5] : memref<128x128xf32, #tpu.memory_space<vmem>>, vector<128x128xf32>
    %cst = arith.constant dense<0.000000e+00> : vector<8x128xf32>
    %6 = tpu.matmul %4, %5, %cst {dimension_numbers = #tpu.dot_dimension_numbers<[1], [0], [0], [1], [0, 0, 1, 1], [], []>, precision = #tpu.contract_precision<fp32>} : vector<8x128xf32>, vector<128x128xf32>, vector<8x128xf32> -> vector<8x128xf32>
    %7 = arith.addf %3, %6 : vector<8x128xf32>
    %c0_6 = arith.constant 0 : index
    %c0_7 = arith.constant 0 : index
    %8 = vector.load %arg6[%c0_6, %c0_7] : memref<8x128xf32, #tpu.memory_space<vmem>>, vector<8x128xf32>
    tpu.vector_store %arg6[%c0_6, %c0_7], %7 {strides = array<i32>} : memref<8x128xf32, #tpu.memory_space<vmem>>, vector<8x128xf32>,
    %c1_i32 = arith.constant 1 : i32
    %9 = arith.cmpi eq, %arg1, %c1_i32 : i32
    %10 = arith.extui %9 : i1 to i32
    %c0_i32_8 = arith.constant 0 : i32
    %11 = arith.cmpi ne, %10, %c0_i32_8 : i32
    scf.if %11 {
      %c0_9 = arith.constant 0 : index
      %c0_10 = arith.constant 0 : index
      %12 = vector.load %arg6[%c0_9, %c0_10] : memref<8x128xf32, #tpu.memory_space<vmem>>, vector<8x128xf32>
      %c0_11 = arith.constant 0 : index
      %c0_12 = arith.constant 0 : index
      %13 = vector.load %arg4[%c0_11, %c0_12] : memref<1x128xf32, #tpu.memory_space<vmem>>, vector<1x128xf32>
      %14 = vector.broadcast %13 : vector<1x128xf32> to vector<8x128xf32>
      %15 = arith.addf %12, %14 : vector<8x128xf32>
      %c0_13 = arith.constant 0 : index
      %c0_14 = arith.constant 0 : index
      %16 = vector.load %arg5[%c0_13, %c0_14] : memref<8x128xf32, #tpu.memory_space<vmem>>, vector<8x128xf32>
      tpu.vector_store %arg5[%c0_13, %c0_14], %15 {strides = array<i32>} : memref<8x128xf32, #tpu.memory_space<vmem>>, vector<8x128xf32>,
    } else {
    }
    return
  }
  func.func @transform_0(%arg0: i32, %arg1: i32) -> (i32, i32) {
    %c0_i32 = arith.constant 0 : i32
    %c0_i32_0 = arith.constant 0 : i32
    return %c0_i32, %arg1 : i32, i32
  }
  func.func @transform_1(%arg0: i32, %arg1: i32) -> (i32, i32) {
    %c0_i32 = arith.constant 0 : i32
    return %arg1, %arg0 : i32, i32
  }
  func.func @transform_2(%arg0: i32, %arg1: i32) -> (i32, i32) {
    %c0_i32 = arith.constant 0 : i32
    %c0_i32_0 = arith.constant 0 : i32
    return %c0_i32, %arg0 : i32, i32
  }
  func.func @transform_3(%arg0: i32, %arg1: i32) -> (i32, i32) {
    %c0_i32 = arith.constant 0 : i32
    %c0_i32_0 = arith.constant 0 : i32
    return %c0_i32, %arg0 : i32, i32
  }
}

</mosaic_0001>

<llo_original>
// kernel: tpu_custom_call.1
$region0: #{tpu_custom_call.1}
  #allocation0 [shape = 'u32[]', space=smem, size = 0x4, offset = 0x4, fixed_abs, tag = 'smem constant byte address 0x4 - core index']
  #allocation1 [shape = 'u32[144,128]{1,0:T(1,128)}', space=vmem, size = 0x12000, scoped, tag = 'internal scratch']
  #allocation2 [shape = 'f32[8,128]{1,0:T(8,128)}', space=vmem, size = 0x1000, scoped, tag = 'scratch operand']
  %s0 = inlined_call_operand.hbm [shape: f32[8,256], index: 0, kind: input, shape index: {}]
  %s1 = inlined_call_operand.hbm [shape: f32[256,256], index: 1, kind: input, shape index: {}]
  %s2 = inlined_call_operand.vmem [shape: f32[1,256], index: 2, kind: input, shape index: {}]
  %s3 = inlined_call_operand.hbm [shape: f32[8,256], index: 3, kind: output, shape index: {}]
  %s4 = sld [smem:[#allocation0]]
  $region61: #{tpu_custom_call.1} parent=0
    _
  %s6 = ssub.s32 1, %s4
  %s7 = scalar_select 0, %s6, %s4
  $region1: #{tpu_custom_call.1} parent=0
    #allocation3 [shape = 'u8[8192]{0}', space=vmem, size = 0x2000, scoped, tag = 'input window, operand 0']
    #allocation4 [shape = 's32[2]{0}', space=sflag, size = 0x8, scoped, tag = 'scoped memory for tpu_custom_call.1']
    #allocation5 [shape = 's32[2]{0}', space=sflag, size = 0x8, scoped, tag = 'scoped memory for tpu_custom_call.1']
    #allocation6 [shape = 'u8[131072]{0}', space=vmem, size = 0x20000, scoped, tag = 'input window, operand 1']
    #allocation7 [shape = 's32[2]{0}', space=sflag, size = 0x8, scoped, tag = 'scoped memory for tpu_custom_call.1']
    #allocation8 [shape = 'u8[8192]{0}', space=vmem, size = 0x2000, scoped, tag = 'output window, operand 0']
    %8 = vsyncpa [#allocation4], 0
    %s9 = scalar_lea.sflag [#allocation4], 1
    %10 = vsyncpa %s9, 0
    %11 = vsyncpa [#allocation7], 0
    %s12 = scalar_lea.sflag [#allocation7], 1
    %13 = vsyncpa %s12, 0
    %14 = vsyncpa [#allocation5], 0
    %s15 = scalar_lea.sflag [#allocation5], 1
    %16 = vsyncpa %s15, 0
    loop: start=0, step=1, limit=6
    $region2: #{tpu_custom_call.1} parent=1 // loop_pre_header
      _
    $region3: #{tpu_custom_call.1} parent=1 // loop_header
      %s18 = sphi 0, %s22
      %p19 = scmp.ge.s32.totalorder %s18, 6
      %s25 = sphi 0, %s37
      %s26 = sphi 0, %s33
      %s27 = sphi 0, %s25
      %s28 = sphi 0, %s26
      %s29 = sphi 0, %s27
      %s30 = sphi 0, %s28
      %s40 = sphi 0, %s42
      %s43 = sphi 0, %s40
      %s44 = sphi 0, %s43
      %s60 = sphi 0, %s44
      %s68 = sphi 0, %s70
      %s71 = sphi 0, %s68
      %s72 = sphi 0, %s71
      %s88 = sphi 0, %s72
      %s94 = sphi 0, %s96
      %s97 = sphi 0, %s94
      %s98 = sphi 0, %s97
      %s114 = sphi 0, %s98
      %s120 = sphi 0, %s122
      %s123 = sphi 0, %s120
      %s124 = sphi 0, %s123
      %s140 = sphi 0, %s124
    $region4: #{tpu_custom_call.1} parent=1 // loop_header_branch
      %21 = sbr.rel (%p19) target = $region8
    $region5: #{tpu_custom_call.1} parent=1 // loop_body
      %s23 = ssub.s32 %s18, 1
      %s24 = ssub.s32 %s18, 2
      %s31 = sadd.s32 1, %s26
      %p32 = scmp.ge.s32.totalorder %s31, 2
      %s33 = scalar_select %p32, 0, %s31
      %s34 = sadd.s32 1, %s25
      %s35 = scalar_select %p32, %s34, %s25
      %p36 = scmp.ge.s32.totalorder %s35, 2
      %s37 = scalar_select %p36, 0, %s35
      %s38 = ssub.s32 %s26, %s33
      %p39 = scmp.eq.s32.totalorder %s38, 0
      %s41 = sadd.s32 %s40, 1
      %s42 = scalar_select %p39, %s40, %s41
      %p45 = pneg %p39
      %p46 = scmp.eq.s32.totalorder %s18, 3
      %p47 = por %p45, %p46
      %p48 = scmp.ne.s32.totalorder %s40, %s43
      %p49 = scmp.eq.s32.totalorder %s18, 0
      %p50 = por %p48, %p49
      %p51 = scmp.ne.s32.totalorder %s40, %s43
      %p52 = scmp.eq.s32.totalorder %s23, 3
      %p53 = por %p51, %p52
      %p54 = scmp.ne.s32.totalorder %s43, %s44
      %p55 = scmp.eq.s32.totalorder %s23, 0
      %p56 = por %p54, %p55
      %p57 = scmp.ne.s32.totalorder %s43, %s44
      %p58 = scmp.eq.s32.totalorder %s24, 3
      %p59 = por %p57, %p58
      %p61 = scmp.ne.s32.totalorder %s44, %s60
      %p62 = scmp.eq.s32.totalorder %s24, 0
      %p63 = por %p61, %p62
      %s64 = ssub.s32 %s26, %s33
      %s65 = ssub.s32 %s25, %s37
      %s66 = sor.u32 %s64, %s65
      %p67 = scmp.eq.s32.totalorder %s66, 0
      %s69 = sadd.s32 %s68, 1
      %s70 = scalar_select %p67, %s68, %s69
      %p73 = pneg %p67
      %p74 = scmp.eq.s32.totalorder %s18, 3
      %p75 = por %p73, %p74
      %p76 = scmp.ne.s32.totalorder %s68, %s71
      %p77 = scmp.eq.s32.totalorder %s18, 0
      %p78 = por %p76, %p77
      %p79 = scmp.ne.s32.totalorder %s68, %s71
      %p80 = scmp.eq.s32.totalorder %s23, 3
      %p81 = por %p79, %p80
      %p82 = scmp.ne.s32.totalorder %s71, %s72
      %p83 = scmp.eq.s32.totalorder %s23, 0
      %p84 = por %p82, %p83
      %p85 = scmp.ne.s32.totalorder %s71, %s72
      %p86 = scmp.eq.s32.totalorder %s24, 3
      %p87 = por %p85, %p86
      %p89 = scmp.ne.s32.totalorder %s72, %s88
      %p90 = scmp.eq.s32.totalorder %s24, 0
      %p91 = por %p89, %p90
      %s92 = ssub.s32 %s25, %s37
      %p93 = scmp.eq.s32.totalorder %s92, 0
      %s95 = sadd.s32 %s94, 1
      %s96 = scalar_select %p93, %s94, %s95
      %p99 = pneg %p93
      %p100 = scmp.eq.s32.totalorder %s18, 3
      %p101 = por %p99, %p100
      %p102 = scmp.ne.s32.totalorder %s94, %s97
      %p103 = scmp.eq.s32.totalorder %s18, 0
      %p104 = por %p102, %p103
      %p105 = scmp.ne.s32.totalorder %s94, %s97
      %p106 = scmp.eq.s32.totalorder %s23, 3
      %p107 = por %p105, %p106
      %p108 = scmp.ne.s32.totalorder %s97, %s98
      %p109 = scmp.eq.s32.totalorder %s23, 0
      %p110 = por %p108, %p109
      %p111 = scmp.ne.s32.totalorder %s97, %s98
      %p112 = scmp.eq.s32.totalorder %s24, 3
      %p113 = por %p111, %p112
      %p115 = scmp.ne.s32.totalorder %s98, %s114
      %p116 = scmp.eq.s32.totalorder %s24, 0
      %p117 = por %p115, %p116
      %s118 = ssub.s32 %s25, %s37
      %p119 = scmp.eq.s32.totalorder %s118, 0
      %s121 = sadd.s32 %s120, 1
      %s122 = scalar_select %p119, %s120, %s121
      %p125 = pneg %p119
      %p126 = scmp.eq.s32.totalorder %s18, 3
      %p127 = por %p125, %p126
      %p128 = scmp.ne.s32.totalorder %s120, %s123
      %p129 = scmp.eq.s32.totalorder %s18, 0
      %p130 = por %p128, %p129
      %p131 = scmp.ne.s32.totalorder %s120, %s123
      %p132 = scmp.eq.s32.totalorder %s23, 3
      %p133 = por %p131, %p132
      %p134 = scmp.ne.s32.totalorder %s123, %s124
      %p135 = scmp.eq.s32.totalorder %s23, 0
      %p136 = por %p134, %p135
      %p137 = scmp.ne.s32.totalorder %s123, %s124
      %p138 = scmp.eq.s32.totalorder %s24, 3
      %p139 = por %p137, %p138
      %p141 = scmp.ne.s32.totalorder %s124, %s140
      %p142 = scmp.eq.s32.totalorder %s24, 0
      %p143 = por %p141, %p142
      %p144 = scmp.le.s32.totalorder 1, %s18
      %p145 = scmp.lt.s32.totalorder %s18, 5
      %p146 = pnand %p144, %p145
      %p147 = pneg %p146
      // Predicated region
      $region9: #{tpu_custom_call.1} parent=5 // pred_check
        _
      $region10: #{tpu_custom_call.1} parent=5 // pred_check_branch
        %149 = sbr.rel (%p146) target = $region12
      $region11: #{tpu_custom_call.1} parent=5 // pred_region
        %s150 = ssub.s32 %s18, 1
      $region12: #{tpu_custom_call.1} parent=5 // pred_fallthru
        _
      %p151 = scmp.lt.s32.totalorder %s18, 4
      // Predicated region
      $region13: #{tpu_custom_call.1} parent=5 // pred_check
        %p152 = pneg %p151
      $region14: #{tpu_custom_call.1} parent=5 // pred_check_branch
        %154 = sbr.rel (%p152) target = $region16
      $region15: #{tpu_custom_call.1} parent=5 // pred_region
        // Predicated region
        $region17: #{tpu_custom_call.1} parent=15 // pred_check
          %p155 = pneg %p50
        $region18: #{tpu_custom_call.1} parent=15 // pred_check_branch
          %157 = sbr.rel (%p155) target = $region20
        $region19: #{tpu_custom_call.1} parent=15 // pred_region
          %s158 = sand.u32 %s40, 1
          %s159 = scalar_lea.sflag [#allocation4], %s158
          %s160 = sand.u32 %s40, 1
          %s161 = smul.addr %s160, 8
          %s162 = scalar_lea.vmem [#allocation3], %s161
          %s164 = ssub.s32 128, 128
          %165 = vsyncadd %s159, %s164
          %s166 = smul.addr %s26, 128
          %s167 = scalar_lea.hbm %s0, %s166
          %s169 = sshll.u32 %s162, 4
          %s170 = int_to_ptr.vmem [resolvable:$true] %s169
          %172 = dma.hbm_to_vmem [thread:$0]  %s167, 128, %s170, %s159
        $region20: #{tpu_custom_call.1} parent=15 // pred_fallthru
          _
        // Predicated region
        $region21: #{tpu_custom_call.1} parent=15 // pred_check
          %p173 = pneg %p78
        $region22: #{tpu_custom_call.1} parent=15 // pred_check_branch
          %175 = sbr.rel (%p173) target = $region24
        $region23: #{tpu_custom_call.1} parent=15 // pred_region
          %s176 = sand.u32 %s68, 1
          %s177 = scalar_lea.sflag [#allocation7], %s176
          %s178 = sand.u32 %s68, 1
          %s179 = smul.addr %s178, 128
          %s180 = scalar_lea.vmem [#allocation6], %s179
          %s181 = smul.u32 16, %s26
          %s183 = ssub.s32 2048, 2048
          %184 = vsyncadd %s177, %s183
          %s185 = smul.addr %s181, 2
          %s186 = sadd.s32 %s25, %s185
          %s187 = smul.addr %s186, 128
          %s188 = scalar_lea.hbm %s1, %s187
          %s189 = sshll.u32 %s180, 4
          %s190 = int_to_ptr.vmem [resolvable:$true] %s189
          %195 = dma.hbm_to_vmem [thread:$0]  %s188, 2048, %s190, %s177, 256, 128, 8
        $region24: #{tpu_custom_call.1} parent=15 // pred_fallthru
          _
        // Predicated region
        $region25: #{tpu_custom_call.1} parent=15 // pred_check
          %p196 = pneg %p104
        $region26: #{tpu_custom_call.1} parent=15 // pred_check_branch
          %198 = sbr.rel (%p196) target = $region28
        $region27: #{tpu_custom_call.1} parent=15 // pred_region
          %p199 = scmp.lt.s32.totalorder %s25, 1
          %s200 = scalar_select %p199, %s25, 1
          %s201 = scalar_lea.vmem %s2, %s200
        $region28: #{tpu_custom_call.1} parent=15 // pred_fallthru
          _
      $region16: #{tpu_custom_call.1} parent=5 // pred_fallthru
        _
      %p202 = scmp.le.s32.totalorder 1, %s18
      %p203 = scmp.lt.s32.totalorder %s18, 5
      %p204 = pnand %p202, %p203
      %p205 = pneg %p204
      // Predicated region
      $region29: #{tpu_custom_call.1} parent=5 // pred_check
        _
      $region30: #{tpu_custom_call.1} parent=5 // pred_check_branch
        %207 = sbr.rel (%p204) target = $region32
      $region31: #{tpu_custom_call.1} parent=5 // pred_region
        %s208 = ssub.s32 %s18, 1
        %s209 = sand.u32 %s43, 1
        %s210 = scalar_lea.sflag [#allocation4], %s209
        %s211 = sand.u32 %s43, 1
        %s212 = smul.addr %s211, 8
        %s213 = scalar_lea.vmem [#allocation3], %s212
        // Predicated region
        $region33: #{tpu_custom_call.1} parent=31 // pred_check
          %p214 = pneg %p56
        $region34: #{tpu_custom_call.1} parent=31 // pred_check_branch
          %216 = sbr.rel (%p214) target = $region36
        $region35: #{tpu_custom_call.1} parent=31 // pred_region
          %217 = dma.done %s210, 128
        $region36: #{tpu_custom_call.1} parent=31 // pred_fallthru
          _
        %s218 = sand.u32 %s71, 1
        %s219 = scalar_lea.sflag [#allocation7], %s218
        %s220 = sand.u32 %s71, 1
        %s221 = smul.addr %s220, 128
        %s222 = scalar_lea.vmem [#allocation6], %s221
        // Predicated region
        $region37: #{tpu_custom_call.1} parent=31 // pred_check
          %p223 = pneg %p84
        $region38: #{tpu_custom_call.1} parent=31 // pred_check_branch
          %225 = sbr.rel (%p223) target = $region40
        $region39: #{tpu_custom_call.1} parent=31 // pred_region
          %226 = dma.done %s219, 2048
        $region40: #{tpu_custom_call.1} parent=31 // pred_fallthru
          _
        %s227 = sand.u32 %s43, 1
        %s228 = scalar_lea.sflag [#allocation4], %s227
        %s229 = sand.u32 %s43, 1
        %s230 = smul.addr %s229, 8
        %s231 = scalar_lea.vmem [#allocation3], %s230
        %p232 = pneg %p56
        %p233 = pneg %p53
        %s234 = sand.u32 %s71, 1
        %s235 = scalar_lea.sflag [#allocation7], %s234
        %s236 = sand.u32 %s71, 1
        %s237 = smul.addr %s236, 128
        %s238 = scalar_lea.vmem [#allocation6], %s237
        %p239 = pneg %p84
        %p240 = pneg %p81
        %p241 = scmp.lt.s32.totalorder %s27, 1
        %s242 = scalar_select %p241, %s27, 1
        %s243 = scalar_lea.vmem %s2, %s242
        %p244 = pneg %p110
        %p245 = pneg %p107
        %p246 = pneg %p136
        %p247 = pneg %p133
        %s248 = sand.u32 %s123, 1
        %s249 = scalar_lea.sflag [#allocation5], %s248
        %s250 = sand.u32 %s123, 1
        %s251 = smul.addr %s250, 8
        %s252 = scalar_lea.vmem [#allocation8], %s251
        %s253 = smul.u32 16, %s28
        %p254 = scmp.lt.s32.totalorder %s27, 1
        %s255 = scalar_select %p254, %s27, 1
        %s256 = scalar_lea.vmem %s2, %s255
        %p257 = scmp.eq.s32.totalorder %s28, 0
        // Predicated region
        $region41: #{tpu_custom_call.1} parent=31 // pred_check
          %p258 = pneg %p257
        $region42: #{tpu_custom_call.1} parent=31 // pred_check_branch
          %260 = sbr.rel (%p258) target = $region44
        $region43: #{tpu_custom_call.1} parent=31 // pred_region
          %261 = vst [vmem:[#allocation2] sm:$0xff] 0.0
        $region44: #{tpu_custom_call.1} parent=31 // pred_fallthru
          _
        %v262 = vld [vmem:[#allocation2] sm:$0xff]
        %v263 = vld [vmem:[%s213] sm:$0xff]
        %v264 = vld [vmem:[%s222] sm:$0xff]
        %v265 = vld [vmem:[%s222 + $0x8] sm:$0xff]
        %v266 = vld [vmem:[%s222 + $0x10] sm:$0xff]
        %v267 = vld [vmem:[%s222 + $0x18] sm:$0xff]
        %v268 = vld [vmem:[%s222 + $0x20] sm:$0xff]
        %v269 = vld [vmem:[%s222 + $0x28] sm:$0xff]
        %v270 = vld [vmem:[%s222 + $0x30] sm:$0xff]
        %v271 = vld [vmem:[%s222 + $0x38] sm:$0xff]
        %v272 = vld [vmem:[%s222 + $0x40] sm:$0xff]
        %v273 = vld [vmem:[%s222 + $0x48] sm:$0xff]
        %v274 = vld [vmem:[%s222 + $0x50] sm:$0xff]
        %v275 = vld [vmem:[%s222 + $0x58] sm:$0xff]
        %v276 = vld [vmem:[%s222 + $0x60] sm:$0xff]
        %v277 = vld [vmem:[%s222 + $0x68] sm:$0xff]
        %v278 = vld [vmem:[%s222 + $0x70] sm:$0xff]
        %v279 = vld [vmem:[%s222 + $0x78] sm:$0xff]
        %280 = vmatprep.subr.mxu0 0.0
        %v281 = vand.u32 %v264, 4294901760
        %282 = vmatpush1.msra.mxu0 %v281
        %283 = vmatprep.subr.mxu0 0.0
        %v284 = vand.u32 %v265, 4294901760
        %285 = vmatpush1.msra.mxu0 %v284
        %286 = vmatprep.subr.mxu0 0.0
        %v287 = vand.u32 %v266, 4294901760
        %288 = vmatpush1.msra.mxu0 %v287
        %289 = vmatprep.subr.mxu0 0.0
        %v290 = vand.u32 %v267, 4294901760
        %291 = vmatpush1.msra.mxu0 %v290
        %292 = vmatprep.subr.mxu0 0.0
        %v293 = vand.u32 %v268, 4294901760
        %294 = vmatpush1.msra.mxu0 %v293
        %295 = vmatprep.subr.mxu0 0.0
        %v296 = vand.u32 %v269, 4294901760
        %297 = vmatpush1.msra.mxu0 %v296
        %298 = vmatprep.subr.mxu0 0.0
        %v299 = vand.u32 %v270, 4294901760
        %300 = vmatpush1.msra.mxu0 %v299
        %301 = vmatprep.subr.mxu0 0.0
        %v302 = vand.u32 %v271, 4294901760
        %303 = vmatpush1.msra.mxu0 %v302
        %304 = vmatprep.subr.mxu0 0.0
        %v305 = vand.u32 %v272, 4294901760
        %306 = vmatpush1.msra.mxu0 %v305
        %307 = vmatprep.subr.mxu0 0.0
        %v308 = vand.u32 %v273, 4294901760
        %309 = vmatpush1.msra.mxu0 %v308
        %310 = vmatprep.subr.mxu0 0.0
        %v311 = vand.u32 %v274, 4294901760
        %312 = vmatpush1.msra.mxu0 %v311
        %313 = vmatprep.subr.mxu0 0.0
        %v314 = vand.u32 %v275, 4294901760
        %315 = vmatpush1.msra.mxu0 %v314
        %316 = vmatprep.subr.mxu0 0.0
        %v317 = vand.u32 %v276, 4294901760
        %318 = vmatpush1.msra.mxu0 %v317
        %319 = vmatprep.subr.mxu0 0.0
        %v320 = vand.u32 %v277, 4294901760
        %321 = vmatpush1.msra.mxu0 %v320
        %322 = vmatprep.subr.mxu0 0.0
        %v323 = vand.u32 %v278, 4294901760
        %324 = vmatpush1.msra.mxu0 %v323
        %325 = vmatprep.subr.mxu0 0.0
        %v326 = vand.u32 %v279, 4294901760
        %327 = vmatpush1.msra.mxu0 %v326
        %328 = vmatprep.subr.mxu0 0.0
        %329 = vmatpush1.msra.mxu0 0.0
        %330 = vmatprep.subr.mxu0 0.0
        %331 = vmatpush1.msra.mxu0 0.0
        %332 = vmatprep.subr.mxu0 0.0
        %333 = vmatpush1.msra.mxu0 0.0
        %334 = vmatprep.subr.mxu0 0.0
        %335 = vmatpush1.msra.mxu0 0.0
        %336 = vmatprep.subr.mxu0 0.0
        %337 = vmatpush1.msra.mxu0 0.0
        %338 = vmatprep.subr.mxu0 0.0
        %339 = vmatpush1.msra.mxu0 0.0
        %340 = vmatprep.subr.mxu0 0.0
        %341 = vmatpush1.msra.mxu0 0.0
        %342 = vmatprep.subr.mxu0 0.0
        %343 = vmatpush1.msra.mxu0 0.0
        %344 = vmatprep.subr.mxu0 0.0
        %345 = vmatpush1.msra.mxu0 0.0
        %346 = vmatprep.subr.mxu0 0.0
        %347 = vmatpush1.msra.mxu0 0.0
        %348 = vmatprep.subr.mxu0 0.0
        %349 = vmatpush1.msra.mxu0 0.0
        %350 = vmatprep.subr.mxu0 0.0
        %351 = vmatpush1.msra.mxu0 0.0
        %352 = vmatprep.subr.mxu0 0.0
        %353 = vmatpush1.msra.mxu0 0.0
        %354 = vmatprep.subr.mxu0 0.0
        %355 = vmatpush1.msra.mxu0 0.0
        %356 = vmatprep.subr.mxu0 0.0
        %357 = vmatpush1.msra.mxu0 0.0
        %358 = vmatprep.subr.mxu0 0.0
        %359 = vmatpush1.msra.mxu0 0.0
        %360 = vmatprep.mubr.f32.mxu0 0.0
        %v361 = vand.u32 %v263, 4294901760
        %v362 = vsub.f32 %v263, %v361
        %v363 = vand.u32 %v362, 4294901760
        %v364 = vsub.f32 %v362, %v363
        %v365 = vand.u32 %v364, 4294901760
        %366 = vmatmul.mubr.f32.gmra.mrb[0].mxu0 %v365
        %v367 = vpop.f32.mrb[0].mxu0
        %v368 = vadd.f32 0.0, %v367
        %v369 = vpop.f32.mrb[0].mxu0
        %370 = vdwg.mxu0
        %371 = vmatprep.subr.mxu0 0.0
        %v372 = vand.u32 %v264, 4294901760
        %v373 = vsub.f32 %v264, %v372
        %v374 = vand.u32 %v373, 4294901760
        %v375 = vsub.f32 %v373, %v374
        %v376 = vand.u32 %v375, 4294901760
        %377 = vmatpush1.msra.mxu0 %v376
        %378 = vmatprep.subr.mxu0 0.0
        %v379 = vand.u32 %v265, 4294901760
        %v380 = vsub.f32 %v265, %v379
        %v381 = vand.u32 %v380, 4294901760
        %v382 = vsub.f32 %v380, %v381
        %v383 = vand.u32 %v382, 4294901760
        %384 = vmatpush1.msra.mxu0 %v383
        %385 = vmatprep.subr.mxu0 0.0
        %v386 = vand.u32 %v266, 4294901760
        %v387 = vsub.f32 %v266, %v386
        %v388 = vand.u32 %v387, 4294901760
        %v389 = vsub.f32 %v387, %v388
        %v390 = vand.u32 %v389, 4294901760
        %391 = vmatpush1.msra.mxu0 %v390
        %392 = vmatprep.subr.mxu0 0.0
        %v393 = vand.u32 %v267, 4294901760
        %v394 = vsub.f32 %v267, %v393
        %v395 = vand.u32 %v394, 4294901760
        %v396 = vsub.f32 %v394, %v395
        %v397 = vand.u32 %v396, 4294901760
        %398 = vmatpush1.msra.mxu0 %v397
        %399 = vmatprep.subr.mxu0 0.0
        %v400 = vand.u32 %v268, 4294901760
        %v401 = vsub.f32 %v268, %v400
        %v402 = vand.u32 %v401, 4294901760
        %v403 = vsub.f32 %v401, %v402
        %v404 = vand.u32 %v403, 4294901760
        %405 = vmatpush1.msra.mxu0 %v404
        %406 = vmatprep.subr.mxu0 0.0
        %v407 = vand.u32 %v269, 4294901760
        %v408 = vsub.f32 %v269, %v407
        %v409 = vand.u32 %v408, 4294901760
        %v410 = vsub.f32 %v408, %v409
        %v411 = vand.u32 %v410, 4294901760
        %412 = vmatpush1.msra.mxu0 %v411
        %413 = vmatprep.subr.mxu0 0.0
        %v414 = vand.u32 %v270, 4294901760
        %v415 = vsub.f32 %v270, %v414
        %v416 = vand.u32 %v415, 4294901760
        %v417 = vsub.f32 %v415, %v416
        %v418 = vand.u32 %v417, 4294901760
        %419 = vmatpush1.msra.mxu0 %v418
        %420 = vmatprep.subr.mxu0 0.0
        %v421 = vand.u32 %v271, 4294901760
        %v422 = vsub.f32 %v271, %v421
        %v423 = vand.u32 %v422, 4294901760
        %v424 = vsub.f32 %v422, %v423
        %v425 = vand.u32 %v424, 4294901760
        %426 = vmatpush1.msra.mxu0 %v425
        %427 = vmatprep.subr.mxu0 0.0
        %v428 = vand.u32 %v272, 4294901760
        %v429 = vsub.f32 %v272, %v428
        %v430 = vand.u32 %v429, 4294901760
        %v431 = vsub.f32 %v429, %v430
        %v432 = vand.u32 %v431, 4294901760
        %433 = vmatpush1.msra.mxu0 %v432
        %434 = vmatprep.subr.mxu0 0.0
        %v435 = vand.u32 %v273, 4294901760
        %v436 = vsub.f32 %v273, %v435
        %v437 = vand.u32 %v436, 4294901760
        %v438 = vsub.f32 %v436, %v437
        %v439 = vand.u32 %v438, 4294901760
        %440 = vmatpush1.msra.mxu0 %v439
        %441 = vmatprep.subr.mxu0 0.0
        %v442 = vand.u32 %v274, 4294901760
        %v443 = vsub.f32 %v274, %v442
        %v444 = vand.u32 %v443, 4294901760
        %v445 = vsub.f32 %v443, %v444
        %v446 = vand.u32 %v445, 4294901760
        %447 = vmatpush1.msra.mxu0 %v446
        %448 = vmatprep.subr.mxu0 0.0
        %v449 = vand.u32 %v275, 4294901760
        %v450 = vsub.f32 %v275, %v449
        %v451 = vand.u32 %v450, 4294901760
        %v452 = vsub.f32 %v450, %v451
        %v453 = vand.u32 %v452, 4294901760
        %454 = vmatpush1.msra.mxu0 %v453
        %455 = vmatprep.subr.mxu0 0.0
        %v456 = vand.u32 %v276, 4294901760
        %v457 = vsub.f32 %v276, %v456
        %v458 = vand.u32 %v457, 4294901760
        %v459 = vsub.f32 %v457, %v458
        %v460 = vand.u32 %v459, 4294901760
        %461 = vmatpush1.msra.mxu0 %v460
        %462 = vmatprep.subr.mxu0 0.0
        %v463 = vand.u32 %v277, 4294901760
        %v464 = vsub.f32 %v277, %v463
        %v465 = vand.u32 %v464, 4294901760
        %v466 = vsub.f32 %v464, %v465
        %v467 = vand.u32 %v466, 4294901760
        %468 = vmatpush1.msra.mxu0 %v467
        %469 = vmatprep.subr.mxu0 0.0
        %v470 = vand.u32 %v278, 4294901760
        %v471 = vsub.f32 %v278, %v470
        %v472 = vand.u32 %v471, 4294901760
        %v473 = vsub.f32 %v471, %v472
        %v474 = vand.u32 %v473, 4294901760
        %475 = vmatpush1.msra.mxu0 %v474
        %476 = vmatprep.subr.mxu0 0.0
        %v477 = vand.u32 %v279, 4294901760
        %v478 = vsub.f32 %v279, %v477
        %v479 = vand.u32 %v478, 4294901760
        %v480 = vsub.f32 %v478, %v479
        %v481 = vand.u32 %v480, 4294901760
        %482 = vmatpush1.msra.mxu0 %v481
        %483 = vmatprep.subr.mxu0 0.0
        %484 = vmatpush1.msra.mxu0 0.0
        %485 = vmatprep.subr.mxu0 0.0
        %486 = vmatpush1.msra.mxu0 0.0
        %487 = vmatprep.subr.mxu0 0.0
        %488 = vmatpush1.msra.mxu0 0.0
        %489 = vmatprep.subr.mxu0 0.0
        %490 = vmatpush1.msra.mxu0 0.0
        %491 = vmatprep.subr.mxu0 0.0
        %492 = vmatpush1.msra.mxu0 0.0
        %493 = vmatprep.subr.mxu0 0.0
        %494 = vmatpush1.msra.mxu0 0.0
        %495 = vmatprep.subr.mxu0 0.0
        %496 = vmatpush1.msra.mxu0 0.0
        %497 = vmatprep.subr.mxu0 0.0
        %498 = vmatpush1.msra.mxu0 0.0
        %499 = vmatprep.subr.mxu0 0.0
        %500 = vmatpush1.msra.mxu0 0.0
        %501 = vmatprep.subr.mxu0 0.0
        %502 = vmatpush1.msra.mxu0 0.0
        %503 = vmatprep.subr.mxu0 0.0
        %504 = vmatpush1.msra.mxu0 0.0
        %505 = vmatprep.subr.mxu0 0.0
        %506 = vmatpush1.msra.mxu0 0.0
        %507 = vmatprep.subr.mxu0 0.0
        %508 = vmatpush1.msra.mxu0 0.0
        %509 = vmatprep.subr.mxu0 0.0
        %510 = vmatpush1.msra.mxu0 0.0
        %511 = vmatprep.subr.mxu0 0.0
        %512 = vmatpush1.msra.mxu0 0.0
        %513 = vmatprep.subr.mxu0 0.0
        %514 = vmatpush1.msra.mxu0 0.0
        %515 = vmatprep.mubr.f32.mxu0 0.0
        %v516 = vand.u32 %v263, 4294901760
        %517 = vmatmul.mubr.f32.gmra.mrb[0].mxu0 %v516
        %v518 = vpop.f32.mrb[0].mxu0
        %v519 = vadd.f32 %v368, %v518
        %v520 = vpop.f32.mrb[0].mxu0
        %521 = vdwg.mxu0
        %522 = vmatprep.subr.mxu0 0.0
        %v523 = vand.u32 %v264, 4294901760
        %v524 = vsub.f32 %v264, %v523
        %525 = vmatpush1.msra.mxu0 %v524
        %526 = vmatprep.subr.mxu0 0.0
        %v527 = vand.u32 %v265, 4294901760
        %v528 = vsub.f32 %v265, %v527
        %529 = vmatpush1.msra.mxu0 %v528
        %530 = vmatprep.subr.mxu0 0.0
        %v531 = vand.u32 %v266, 4294901760
        %v532 = vsub.f32 %v266, %v531
        %533 = vmatpush1.msra.mxu0 %v532
        %534 = vmatprep.subr.mxu0 0.0
        %v535 = vand.u32 %v267, 4294901760
        %v536 = vsub.f32 %v267, %v535
        %537 = vmatpush1.msra.mxu0 %v536
        %538 = vmatprep.subr.mxu0 0.0
        %v539 = vand.u32 %v268, 4294901760
        %v540 = vsub.f32 %v268, %v539
        %541 = vmatpush1.msra.mxu0 %v540
        %542 = vmatprep.subr.mxu0 0.0
        %v543 = vand.u32 %v269, 4294901760
        %v544 = vsub.f32 %v269, %v543
        %545 = vmatpush1.msra.mxu0 %v544
        %546 = vmatprep.subr.mxu0 0.0
        %v547 = vand.u32 %v270, 4294901760
        %v548 = vsub.f32 %v270, %v547
        %549 = vmatpush1.msra.mxu0 %v548
        %550 = vmatprep.subr.mxu0 0.0
        %v551 = vand.u32 %v271, 4294901760
        %v552 = vsub.f32 %v271, %v551
        %553 = vmatpush1.msra.mxu0 %v552
        %554 = vmatprep.subr.mxu0 0.0
        %v555 = vand.u32 %v272, 4294901760
        %v556 = vsub.f32 %v272, %v555
        %557 = vmatpush1.msra.mxu0 %v556
        %558 = vmatprep.subr.mxu0 0.0
        %v559 = vand.u32 %v273, 4294901760
        %v560 = vsub.f32 %v273, %v559
        %561 = vmatpush1.msra.mxu0 %v560
        %562 = vmatprep.subr.mxu0 0.0
        %v563 = vand.u32 %v274, 4294901760
        %v564 = vsub.f32 %v274, %v563
        %565 = vmatpush1.msra.mxu0 %v564
        %566 = vmatprep.subr.mxu0 0.0
        %v567 = vand.u32 %v275, 4294901760
        %v568 = vsub.f32 %v275, %v567
        %569 = vmatpush1.msra.mxu0 %v568
        %570 = vmatprep.subr.mxu0 0.0
        %v571 = vand.u32 %v276, 4294901760
        %v572 = vsub.f32 %v276, %v571
        %573 = vmatpush1.msra.mxu0 %v572
        %574 = vmatprep.subr.mxu0 0.0
        %v575 = vand.u32 %v277, 4294901760
        %v576 = vsub.f32 %v277, %v575
        %577 = vmatpush1.msra.mxu0 %v576
        %578 = vmatprep.subr.mxu0 0.0
        %v579 = vand.u32 %v278, 4294901760
        %v580 = vsub.f32 %v278, %v579
        %581 = vmatpush1.msra.mxu0 %v580
        %582 = vmatprep.subr.mxu0 0.0
        %v583 = vand.u32 %v279, 4294901760
        %v584 = vsub.f32 %v279, %v583
        %585 = vmatpush1.msra.mxu0 %v584
        %586 = vmatprep.subr.mxu0 0.0
        %587 = vmatpush1.msra.mxu0 0.0
        %588 = vmatprep.subr.mxu0 0.0
        %589 = vmatpush1.msra.mxu0 0.0
        %590 = vmatprep.subr.mxu0 0.0
        %591 = vmatpush1.msra.mxu0 0.0
        %592 = vmatprep.subr.mxu0 0.0
        %593 = vmatpush1.msra.mxu0 0.0
        %594 = vmatprep.subr.mxu0 0.0
        %595 = vmatpush1.msra.mxu0 0.0
        %596 = vmatprep.subr.mxu0 0.0
        %597 = vmatpush1.msra.mxu0 0.0
        %598 = vmatprep.subr.mxu0 0.0
        %599 = vmatpush1.msra.mxu0 0.0
        %600 = vmatprep.subr.mxu0 0.0
        %601 = vmatpush1.msra.mxu0 0.0
        %602 = vmatprep.subr.mxu0 0.0
        %603 = vmatpush1.msra.mxu0 0.0
        %604 = vmatprep.subr.mxu0 0.0
        %605 = vmatpush1.msra.mxu0 0.0
        %606 = vmatprep.subr.mxu0 0.0
        %607 = vmatpush1.msra.mxu0 0.0
        %608 = vmatprep.subr.mxu0 0.0
        %609 = vmatpush1.msra.mxu0 0.0
        %610 = vmatprep.subr.mxu0 0.0
        %611 = vmatpush1.msra.mxu0 0.0
        %612 = vmatprep.subr.mxu0 0.0
        %613 = vmatpush1.msra.mxu0 0.0
        %614 = vmatprep.subr.mxu0 0.0
        %615 = vmatpush1.msra.mxu0 0.0
        %616 = vmatprep.subr.mxu0 0.0
        %617 = vmatpush1.msra.mxu0 0.0
        %618 = vmatprep.mubr.f32.mxu0 0.0
        %v619 = vand.u32 %v263, 4294901760
        %v620 = vsub.f32 %v263, %v619
        %621 = vmatmul.mubr.f32.gmra.mrb[0].mxu0 %v620
        %v622 = vpop.f32.mrb[0].mxu0
        %v623 = vadd.f32 %v519, %v622
        %v624 = vpop.f32.mrb[0].mxu0
        %625 = vdwg.mxu0
        %626 = vmatprep.subr.mxu0 0.0
        %v627 = vand.u32 %v264, 4294901760
        %628 = vmatpush1.msra.mxu0 %v627
        %629 = vmatprep.subr.mxu0 0.0
        %v630 = vand.u32 %v265, 4294901760
        %631 = vmatpush1.msra.mxu0 %v630
        %632 = vmatprep.subr.mxu0 0.0
        %v633 = vand.u32 %v266, 4294901760
        %634 = vmatpush1.msra.mxu0 %v633
        %635 = vmatprep.subr.mxu0 0.0
        %v636 = vand.u32 %v267, 4294901760
        %637 = vmatpush1.msra.mxu0 %v636
        %638 = vmatprep.subr.mxu0 0.0
        %v639 = vand.u32 %v268, 4294901760
        %640 = vmatpush1.msra.mxu0 %v639
        %641 = vmatprep.subr.mxu0 0.0
        %v642 = vand.u32 %v269, 4294901760
        %643 = vmatpush1.msra.mxu0 %v642
        %644 = vmatprep.subr.mxu0 0.0
        %v645 = vand.u32 %v270, 4294901760
        %646 = vmatpush1.msra.mxu0 %v645
        %647 = vmatprep.subr.mxu0 0.0
        %v648 = vand.u32 %v271, 4294901760
        %649 = vmatpush1.msra.mxu0 %v648
        %650 = vmatprep.subr.mxu0 0.0
        %v651 = vand.u32 %v272, 4294901760
        %652 = vmatpush1.msra.mxu0 %v651
        %653 = vmatprep.subr.mxu0 0.0
        %v654 = vand.u32 %v273, 4294901760
        %655 = vmatpush1.msra.mxu0 %v654
        %656 = vmatprep.subr.mxu0 0.0
        %v657 = vand.u32 %v274, 4294901760
        %658 = vmatpush1.msra.mxu0 %v657
        %659 = vmatprep.subr.mxu0 0.0
        %v660 = vand.u32 %v275, 4294901760
        %661 = vmatpush1.msra.mxu0 %v660
        %662 = vmatprep.subr.mxu0 0.0
        %v663 = vand.u32 %v276, 4294901760
        %664 = vmatpush1.msra.mxu0 %v663
        %665 = vmatprep.subr.mxu0 0.0
        %v666 = vand.u32 %v277, 4294901760
        %667 = vmatpush1.msra.mxu0 %v666
        %668 = vmatprep.subr.mxu0 0.0
        %v669 = vand.u32 %v278, 4294901760
        %670 = vmatpush1.msra.mxu0 %v669
        %671 = vmatprep.subr.mxu0 0.0
        %v672 = vand.u32 %v279, 4294901760
        %673 = vmatpush1.msra.mxu0 %v672
        %674 = vmatprep.subr.mxu0 0.0
        %675 = vmatpush1.msra.mxu0 0.0
        %676 = vmatprep.subr.mxu0 0.0
        %677 = vmatpush1.msra.mxu0 0.0
        %678 = vmatprep.subr.mxu0 0.0
        %679 = vmatpush1.msra.mxu0 0.0
        %680 = vmatprep.subr.mxu0 0.0
        %681 = vmatpush1.msra.mxu0 0.0
        %682 = vmatprep.subr.mxu0 0.0
        %683 = vmatpush1.msra.mxu0 0.0
        %684 = vmatprep.subr.mxu0 0.0
        %685 = vmatpush1.msra.mxu0 0.0
        %686 = vmatprep.subr.mxu0 0.0
        %687 = vmatpush1.msra.mxu0 0.0
        %688 = vmatprep.subr.mxu0 0.0
        %689 = vmatpush1.msra.mxu0 0.0
        %690 = vmatprep.subr.mxu0 0.0
        %691 = vmatpush1.msra.mxu0 0.0
        %692 = vmatprep.subr.mxu0 0.0
        %693 = vmatpush1.msra.mxu0 0.0
        %694 = vmatprep.subr.mxu0 0.0
        %695 = vmatpush1.msra.mxu0 0.0
        %696 = vmatprep.subr.mxu0 0.0
        %697 = vmatpush1.msra.mxu0 0.0
        %698 = vmatprep.subr.mxu0 0.0
        %699 = vmatpush1.msra.mxu0 0.0
        %700 = vmatprep.subr.mxu0 0.0
        %701 = vmatpush1.msra.mxu0 0.0
        %702 = vmatprep.subr.mxu0 0.0
        %703 = vmatpush1.msra.mxu0 0.0
        %704 = vmatprep.subr.mxu0 0.0
        %705 = vmatpush1.msra.mxu0 0.0
        %706 = vmatprep.mubr.f32.mxu0 0.0
        %v707 = vand.u32 %v263, 4294901760
        %v708 = vsub.f32 %v263, %v707
        %v709 = vand.u32 %v708, 4294901760
        %710 = vmatmul.mubr.f32.gmra.mrb[0].mxu0 %v709
        %v711 = vpop.f32.mrb[0].mxu0
        %v712 = vadd.f32 %v623, %v711
        %v713 = vpop.f32.mrb[0].mxu0
        %714 = vdwg.mxu0
        %715 = vmatprep.subr.mxu0 0.0
        %v716 = vand.u32 %v264, 4294901760
        %v717 = vsub.f32 %v264, %v716
        %v718 = vand.u32 %v717, 4294901760
        %719 = vmatpush1.msra.mxu0 %v718
        %720 = vmatprep.subr.mxu0 0.0
        %v721 = vand.u32 %v265, 4294901760
        %v722 = vsub.f32 %v265, %v721
        %v723 = vand.u32 %v722, 4294901760
        %724 = vmatpush1.msra.mxu0 %v723
        %725 = vmatprep.subr.mxu0 0.0
        %v726 = vand.u32 %v266, 4294901760
        %v727 = vsub.f32 %v266, %v726
        %v728 = vand.u32 %v727, 4294901760
        %729 = vmatpush1.msra.mxu0 %v728
        %730 = vmatprep.subr.mxu0 0.0
        %v731 = vand.u32 %v267, 4294901760
        %v732 = vsub.f32 %v267, %v731
        %v733 = vand.u32 %v732, 4294901760
        %734 = vmatpush1.msra.mxu0 %v733
        %735 = vmatprep.subr.mxu0 0.0
        %v736 = vand.u32 %v268, 4294901760
        %v737 = vsub.f32 %v268, %v736
        %v738 = vand.u32 %v737, 4294901760
        %739 = vmatpush1.msra.mxu0 %v738
        %740 = vmatprep.subr.mxu0 0.0
        %v741 = vand.u32 %v269, 4294901760
        %v742 = vsub.f32 %v269, %v741
        %v743 = vand.u32 %v742, 4294901760
        %744 = vmatpush1.msra.mxu0 %v743
        %745 = vmatprep.subr.mxu0 0.0
        %v746 = vand.u32 %v270, 4294901760
        %v747 = vsub.f32 %v270, %v746
        %v748 = vand.u32 %v747, 4294901760
        %749 = vmatpush1.msra.mxu0 %v748
        %750 = vmatprep.subr.mxu0 0.0
        %v751 = vand.u32 %v271, 4294901760
        %v752 = vsub.f32 %v271, %v751
        %v753 = vand.u32 %v752, 4294901760
        %754 = vmatpush1.msra.mxu0 %v753
        %755 = vmatprep.subr.mxu0 0.0
        %v756 = vand.u32 %v272, 4294901760
        %v757 = vsub.f32 %v272, %v756
        %v758 = vand.u32 %v757, 4294901760
        %759 = vmatpush1.msra.mxu0 %v758
        %760 = vmatprep.subr.mxu0 0.0
        %v761 = vand.u32 %v273, 4294901760
        %v762 = vsub.f32 %v273, %v761
        %v763 = vand.u32 %v762, 4294901760
        %764 = vmatpush1.msra.mxu0 %v763
        %765 = vmatprep.subr.mxu0 0.0
        %v766 = vand.u32 %v274, 4294901760
        %v767 = vsub.f32 %v274, %v766
        %v768 = vand.u32 %v767, 4294901760
        %769 = vmatpush1.msra.mxu0 %v768
        %770 = vmatprep.subr.mxu0 0.0
        %v771 = vand.u32 %v275, 4294901760
        %v772 = vsub.f32 %v275, %v771
        %v773 = vand.u32 %v772, 4294901760
        %774 = vmatpush1.msra.mxu0 %v773
        %775 = vmatprep.subr.mxu0 0.0
        %v776 = vand.u32 %v276, 4294901760
        %v777 = vsub.f32 %v276, %v776
        %v778 = vand.u32 %v777, 4294901760
        %779 = vmatpush1.msra.mxu0 %v778
        %780 = vmatprep.subr.mxu0 0.0
        %v781 = vand.u32 %v277, 4294901760
        %v782 = vsub.f32 %v277, %v781
        %v783 = vand.u32 %v782, 4294901760
        %784 = vmatpush1.msra.mxu0 %v783
        %785 = vmatprep.subr.mxu0 0.0
        %v786 = vand.u32 %v278, 4294901760
        %v787 = vsub.f32 %v278, %v786
        %v788 = vand.u32 %v787, 4294901760
        %789 = vmatpush1.msra.mxu0 %v788
        %790 = vmatprep.subr.mxu0 0.0
        %v791 = vand.u32 %v279, 4294901760
        %v792 = vsub.f32 %v279, %v791
        %v793 = vand.u32 %v792, 4294901760
        %794 = vmatpush1.msra.mxu0 %v793
        %795 = vmatprep.subr.mxu0 0.0
        %796 = vmatpush1.msra.mxu0 0.0
        %797 = vmatprep.subr.mxu0 0.0
        %798 = vmatpush1.msra.mxu0 0.0
        %799 = vmatprep.subr.mxu0 0.0
        %800 = vmatpush1.msra.mxu0 0.0
        %801 = vmatprep.subr.mxu0 0.0
        %802 = vmatpush1.msra.mxu0 0.0
        %803 = vmatprep.subr.mxu0 0.0
        %804 = vmatpush1.msra.mxu0 0.0
        %805 = vmatprep.subr.mxu0 0.0
        %806 = vmatpush1.msra.mxu0 0.0
        %807 = vmatprep.subr.mxu0 0.0
        %808 = vmatpush1.msra.mxu0 0.0
        %809 = vmatprep.subr.mxu0 0.0
        %810 = vmatpush1.msra.mxu0 0.0
        %811 = vmatprep.subr.mxu0 0.0
        %812 = vmatpush1.msra.mxu0 0.0
        %813 = vmatprep.subr.mxu0 0.0
        %814 = vmatpush1.msra.mxu0 0.0
        %815 = vmatprep.subr.mxu0 0.0
        %816 = vmatpush1.msra.mxu0 0.0
        %817 = vmatprep.subr.mxu0 0.0
        %818 = vmatpush1.msra.mxu0 0.0
        %819 = vmatprep.subr.mxu0 0.0
        %820 = vmatpush1.msra.mxu0 0.0
        %821 = vmatprep.subr.mxu0 0.0
        %822 = vmatpush1.msra.mxu0 0.0
        %823 = vmatprep.subr.mxu0 0.0
        %824 = vmatpush1.msra.mxu0 0.0
        %825 = vmatprep.subr.mxu0 0.0
        %826 = vmatpush1.msra.mxu0 0.0
        %827 = vmatprep.mubr.f32.mxu0 0.0
        %v828 = vand.u32 %v263, 4294901760
        %829 = vmatmul.mubr.f32.gmra.mrb[0].mxu0 %v828
        %v830 = vpop.f32.mrb[0].mxu0
        %v831 = vadd.f32 %v712, %v830
        %v832 = vpop.f32.mrb[0].mxu0
        %833 = vdwg.mxu0
        %834 = vmatprep.subr.mxu0 0.0
        %v835 = vand.u32 %v264, 4294901760
        %836 = vmatpush1.msra.mxu0 %v835
        %837 = vmatprep.subr.mxu0 0.0
        %v838 = vand.u32 %v265, 4294901760
        %839 = vmatpush1.msra.mxu0 %v838
        %840 = vmatprep.subr.mxu0 0.0
        %v841 = vand.u32 %v266, 4294901760
        %842 = vmatpush1.msra.mxu0 %v841
        %843 = vmatprep.subr.mxu0 0.0
        %v844 = vand.u32 %v267, 4294901760
        %845 = vmatpush1.msra.mxu0 %v844
        %846 = vmatprep.subr.mxu0 0.0
        %v847 = vand.u32 %v268, 4294901760
        %848 = vmatpush1.msra.mxu0 %v847
        %849 = vmatprep.subr.mxu0 0.0
        %v850 = vand.u32 %v269, 4294901760
        %851 = vmatpush1.msra.mxu0 %v850
        %852 = vmatprep.subr.mxu0 0.0
        %v853 = vand.u32 %v270, 4294901760
        %854 = vmatpush1.msra.mxu0 %v853
        %855 = vmatprep.subr.mxu0 0.0
        %v856 = vand.u32 %v271, 4294901760
        %857 = vmatpush1.msra.mxu0 %v856
        %858 = vmatprep.subr.mxu0 0.0
        %v859 = vand.u32 %v272, 4294901760
        %860 = vmatpush1.msra.mxu0 %v859
        %861 = vmatprep.subr.mxu0 0.0
        %v862 = vand.u32 %v273, 4294901760
        %863 = vmatpush1.msra.mxu0 %v862
        %864 = vmatprep.subr.mxu0 0.0
        %v865 = vand.u32 %v274, 4294901760
        %866 = vmatpush1.msra.mxu0 %v865
        %867 = vmatprep.subr.mxu0 0.0
        %v868 = vand.u32 %v275, 4294901760
        %869 = vmatpush1.msra.mxu0 %v868
        %870 = vmatprep.subr.mxu0 0.0
        %v871 = vand.u32 %v276, 4294901760
        %872 = vmatpush1.msra.mxu0 %v871
        %873 = vmatprep.subr.mxu0 0.0
        %v874 = vand.u32 %v277, 4294901760
        %875 = vmatpush1.msra.mxu0 %v874
        %876 = vmatprep.subr.mxu0 0.0
        %v877 = vand.u32 %v278, 4294901760
        %878 = vmatpush1.msra.mxu0 %v877
        %879 = vmatprep.subr.mxu0 0.0
        %v880 = vand.u32 %v279, 4294901760
        %881 = vmatpush1.msra.mxu0 %v880
        %882 = vmatprep.subr.mxu0 0.0
        %883 = vmatpush1.msra.mxu0 0.0
        %884 = vmatprep.subr.mxu0 0.0
        %885 = vmatpush1.msra.mxu0 0.0
        %886 = vmatprep.subr.mxu0 0.0
        %887 = vmatpush1.msra.mxu0 0.0
        %888 = vmatprep.subr.mxu0 0.0
        %889 = vmatpush1.msra.mxu0 0.0
        %890 = vmatprep.subr.mxu0 0.0
        %891 = vmatpush1.msra.mxu0 0.0
        %892 = vmatprep.subr.mxu0 0.0
        %893 = vmatpush1.msra.mxu0 0.0
        %894 = vmatprep.subr.mxu0 0.0
        %895 = vmatpush1.msra.mxu0 0.0
        %896 = vmatprep.subr.mxu0 0.0
        %897 = vmatpush1.msra.mxu0 0.0
        %898 = vmatprep.subr.mxu0 0.0
        %899 = vmatpush1.msra.mxu0 0.0
        %900 = vmatprep.subr.mxu0 0.0
        %901 = vmatpush1.msra.mxu0 0.0
        %902 = vmatprep.subr.mxu0 0.0
        %903 = vmatpush1.msra.mxu0 0.0
        %904 = vmatprep.subr.mxu0 0.0
        %905 = vmatpush1.msra.mxu0 0.0
        %906 = vmatprep.subr.mxu0 0.0
        %907 = vmatpush1.msra.mxu0 0.0
        %908 = vmatprep.subr.mxu0 0.0
        %909 = vmatpush1.msra.mxu0 0.0
        %910 = vmatprep.subr.mxu0 0.0
        %911 = vmatpush1.msra.mxu0 0.0
        %912 = vmatprep.subr.mxu0 0.0
        %913 = vmatpush1.msra.mxu0 0.0
        %914 = vmatprep.mubr.f32.mxu0 0.0
        %v915 = vand.u32 %v263, 4294901760
        %916 = vmatmul.mubr.f32.gmra.mrb[0].mxu0 %v915
        %v917 = vpop.f32.mrb[0].mxu0
        %v918 = vadd.f32 %v831, %v917
        %v919 = vpop.f32.mrb[0].mxu0
        %920 = vdwg.mxu0
        %v921 = vadd.f32 %v262, %v918
        %922 = vst [vmem:[#allocation2] sm:$0xff] %v921
        %p923 = scmp.eq.s32.totalorder %s28, 1
        // Predicated region
        $region45: #{tpu_custom_call.1} parent=31 // pred_check
          %p924 = pneg %p923
        $region46: #{tpu_custom_call.1} parent=31 // pred_check_branch
          %926 = sbr.rel (%p924) target = $region48
        $region47: #{tpu_custom_call.1} parent=31 // pred_region
          %v927 = vld [vmem:[#allocation2] sm:$0xff]
          %v928 = vld [vmem:[%s256] sm:$0x1]
          %v930 = vlaneseq
          %v931 = vshrl.u32 %v930, 7
          %v932 = vsub.s32 0, %v931
          %v933 = vrot.slane %v928, %v932
          %v935 = vadd.f32 %v927, %v933
          %936 = vst [vmem:[%s252] sm:$0xff] %v935
        $region48: #{tpu_custom_call.1} parent=31 // pred_fallthru
          _
        %s937 = sand.u32 %s123, 1
        %s938 = scalar_lea.sflag [#allocation5], %s937
        %s939 = sand.u32 %s123, 1
        %s940 = smul.addr %s939, 8
        %s941 = scalar_lea.vmem [#allocation8], %s940
        // Predicated region
        $region49: #{tpu_custom_call.1} parent=31 // pred_check
          %p942 = pneg %p133
        $region50: #{tpu_custom_call.1} parent=31 // pred_check_branch
          %944 = sbr.rel (%p942) target = $region52
        $region51: #{tpu_custom_call.1} parent=31 // pred_region
          %s946 = ssub.s32 128, 128
          %947 = vsyncadd %s938, %s946
          %s948 = smul.addr %s27, 128
          %s949 = scalar_lea.hbm %s3, %s948
          %s951 = sshll.u32 %s941, 4
          %s952 = int_to_ptr.vmem [resolvable:$true] %s951
          %954 = dma.vmem_to_hbm [thread:$0]  %s952, 128, %s949, %s938
        $region52: #{tpu_custom_call.1} parent=31 // pred_fallthru
          _
      $region32: #{tpu_custom_call.1} parent=5 // pred_fallthru
        _
      %p955 = scmp.le.s32.totalorder 2, %s18
      // Predicated region
      $region53: #{tpu_custom_call.1} parent=5 // pred_check
        %p956 = pneg %p955
      $region54: #{tpu_custom_call.1} parent=5 // pred_check_branch
        %958 = sbr.rel (%p956) target = $region56
      $region55: #{tpu_custom_call.1} parent=5 // pred_region
        %s959 = ssub.s32 %s18, 2
        // Predicated region
        $region57: #{tpu_custom_call.1} parent=55 // pred_check
          %p960 = pneg %p139
        $region58: #{tpu_custom_call.1} parent=55 // pred_check_branch
          %962 = sbr.rel (%p960) target = $region60
        $region59: #{tpu_custom_call.1} parent=55 // pred_region
          %s963 = sand.u32 %s124, 1
          %s964 = scalar_lea.sflag [#allocation5], %s963
          %s965 = sand.u32 %s124, 1
          %s966 = smul.addr %s965, 8
          %s967 = scalar_lea.vmem [#allocation8], %s966
          %968 = dma.done %s964, 128
        $region60: #{tpu_custom_call.1} parent=55 // pred_fallthru
          _
      $region56: #{tpu_custom_call.1} parent=5 // pred_fallthru
        _
    $region6: #{tpu_custom_call.1} parent=1 // loop_footer
      %s22 = sadd.s32 1, %s18
    $region7: #{tpu_custom_call.1} parent=1 // loop_footer_branch
      %17 = sbr.rel target = $region3
    $region8: #{tpu_custom_call.1} parent=1 // loop_exit
      _
    %969 = vsyncpa [#allocation4], 1
    %s970 = scalar_lea.sflag [#allocation4], 1
    %971 = vsyncpa %s970, 1
    %972 = vsyncpa [#allocation7], 1
    %s973 = scalar_lea.sflag [#allocation7], 1
    %974 = vsyncpa %s973, 1
    %975 = vsyncpa [#allocation5], 1
    %s976 = scalar_lea.sflag [#allocation5], 1
    %977 = vsyncpa %s976, 1

</llo_original>
